<compile_context>
chip_gen: v5e
topology: v5e:2x2
jax: 0.10.0
libtpu: 0.0.40
codegen_flags: <defaults>
</compile_context>

<pallas_src>
import jax
import jax.numpy as jnp
from jax import lax
from jax.experimental import pallas as pl
from jax.experimental.pallas import tpu as pltpu


_LANE = 1024          # wide last dim -> long, unmasked vector stores / long DMAs
_SUBLANE = 8          # f32 sublane granularity
_MAX_BLOCK_ROWS = 512 # 512 * 1024 * 4 B = 2 MiB per block buffer
_MIN_PALLAS_F32 = _SUBLANE * 128  # below one (8,128) tile, plain JAX wins


def _crelu_kernel(x_ref, o_ref):
    # Pure VPU elementwise hot path: ReLU on the interleaved real/imag f32 slab.
    o_ref[...] = jnp.maximum(x_ref[...], 0.0)


@jax.jit
def complex_relu(x: jax.Array) -> jax.Array:
    """ComplexReLU: relu(real) + 1j * relu(imag), for complex64 arrays."""
    if x.dtype != jnp.complex64:
        raise TypeError(f"complex_relu expects complex64, got {x.dtype}")

    orig_shape = x.shape
    n = 1
    for d in orig_shape:
        n *= d
    if n == 0:
        return x

    # Single fused pass: split into one flat f32 buffer [real | imag].
    xr = jnp.real(x).reshape(-1)
    xi = jnp.imag(x).reshape(-1)
    xf = jnp.concatenate([xr, xi])          # (2n,) float32
    total = 2 * n

    if total < _MIN_PALLAS_F32:
        # Tiny input: kernel-launch + DMA setup would dwarf the work.
        yf = jnp.maximum(xf, 0.0)
    else:
        # Lane-dense 2-D slab, rows padded to a multiple of the sublane count.
        rows = pl.cdiv(total, _LANE)
        rows = ((rows + _SUBLANE - 1) // _SUBLANE) * _SUBLANE
        padded = rows * _LANE
        if padded != total:
            xf = jnp.pad(xf, (0, padded - total))
        x2d = xf.reshape(rows, _LANE)

        block_rows = min(_MAX_BLOCK_ROWS, rows)   # rows is a multiple of 8
        grid = (pl.cdiv(rows, block_rows),)       # ragged last block is fine
        spec = pl.BlockSpec((block_rows, _LANE), lambda i: (i, 0))

        y2d = pl.pallas_call(
            _crelu_kernel,
            out_shape=jax.ShapeDtypeStruct((rows, _LANE), jnp.float32),
            grid_spec=pltpu.PrefetchScalarGridSpec(
                num_scalar_prefetch=0,
                grid=grid,
                in_specs=[spec],
                out_specs=spec,
            ),
            input_output_aliases={0: 0},  # elementwise & size-preserving: reuse HBM buffer
            compiler_params=pltpu.CompilerParams(
                dimension_semantics=("parallel",),
            ),
        )(x2d)
        yf = y2d.reshape(-1)

    # Single fused pass: recombine the two planes into complex64.
    yr = yf[:n].reshape(orig_shape)
    yi = yf[n:2 * n].reshape(orig_shape)
    return lax.complex(yr, yi)


def _reference(x):
    return lax.complex(jnp.maximum(jnp.real(x), 0.0),
                       jnp.maximum(jnp.imag(x), 0.0))


if __name__ == "__main__":
    key = jax.random.PRNGKey(0)
    k1, k2, k3, k4 = jax.random.split(key, 4)

    def make(shape, kr, ki):
        return lax.complex(jax.random.normal(kr, shape, dtype=jnp.float32),
                           jax.random.normal(ki, shape, dtype=jnp.float32))

    # Primary: small NCHW complex input (batch=2, channels=4, spatial=16x16).
    x_small = make((2, 4, 16, 16), k1, k2)
    y_small = complex_relu(x_small)
    jax.block_until_ready(y_small)
    assert y_small.shape == x_small.shape and y_small.dtype == x_small.dtype
    assert jnp.allclose(y_small, _reference(x_small)), "mismatch (small input)"

    # Secondary: larger input exercising a multi-step (megacore-shardable) grid.
    x_big = make((2, 8, 128, 256), k3, k4)
    y_big = complex_relu(x_big)
    jax.block_until_ready(y_big)
    assert jnp.allclose(y_big, _reference(x_big)), "mismatch (large input)"

    print("KERNEL_OK")
</pallas_src>

<mosaic_0001>
module attributes {stable_mosaic.version = 11 : i64} {
  func.func @_crelu_kernel(%arg0: i32, %arg1: memref<8x1024xf32, #tpu.memory_space<vmem>>, %arg2: memref<8x1024xf32, #tpu.memory_space<vmem>>) attributes {dimension_semantics = [#tpu.dimension_semantics<parallel>], iteration_bounds = array<i64: 1>, scalar_prefetch = 0 : i64, scratch_operands = 0 : i64, tpu.core_type = #tpu.core_type<tc>, window_params = [{transform_indices = @transform_0, window_bounds = array<i64: 8, 1024>}, {transform_indices = @transform_1, window_bounds = array<i64: 8, 1024>}]} {
    %c0 = arith.constant 0 : index
    %c0_0 = arith.constant 0 : index
    %0 = vector.load %arg1[%c0, %c0_0] : memref<8x1024xf32, #tpu.memory_space<vmem>>, vector<8x1024xf32>
    %cst = arith.constant 0.000000e+00 : f32
    %1 = vector.broadcast %cst : f32 to vector<8x1024xf32>
    %2 = arith.maximumf %0, %1 : vector<8x1024xf32>
    %c0_1 = arith.constant 0 : index
    %c0_2 = arith.constant 0 : index
    %3 = vector.load %arg2[%c0_1, %c0_2] : memref<8x1024xf32, #tpu.memory_space<vmem>>, vector<8x1024xf32>
    tpu.vector_store %arg2[%c0_1, %c0_2], %2 {strides = array<i32>} : memref<8x1024xf32, #tpu.memory_space<vmem>>, vector<8x1024xf32>,
    return
  }
  func.func @transform_0(%arg0: i32) -> (i32, i32) {
    %c0_i32 = arith.constant 0 : i32
    %c0_i32_0 = arith.constant 0 : i32
    return %arg0, %c0_i32 : i32, i32
  }
  func.func @transform_1(%arg0: i32) -> (i32, i32) {
    %c0_i32 = arith.constant 0 : i32
    %c0_i32_0 = arith.constant 0 : i32
    return %arg0, %c0_i32 : i32, i32
  }
}

</mosaic_0001>

<llo_original>
// kernel: custom-call.1
$region0: #{custom-call.1}
  %s0 = inlined_call_operand.hbm [shape: c64[2,4,16,16], index: 0, kind: input, shape index: {}]
  %s1 = inlined_call_operand.vmem [shape: f32[2,4,16,16], index: 1, kind: output, shape index: {}]
  %s2 = scalar_lea.hbm %s0, 128
  $region1: #{custom-call.1} parent=0
    #allocation0 [shape = 's32[1]{0}', space=sflag, size = 0x4, scoped, tag = 'scoped memory for custom-call.1']
    %3 = vsyncpa [#allocation0], 0
    %s5 = sshll.u32 %s2, 4
    %s6 = int_to_ptr.hbm [resolvable:$true] %s5
    %s7 = sshll.u32 %s1, 4
    %s8 = int_to_ptr.vmem [resolvable:$true] %s7
    %10 = dma.hbm_to_vmem [thread:$0]  %s6, 2048, %s8, [#allocation0]
    %12 = dma.done [#allocation0], 2048
    %13 = vsyncpa [#allocation0], 1

// kernel: custom-call
$region0: #{custom-call}
  %s0 = inlined_call_operand.hbm [shape: c64[2,4,16,16], index: 0, kind: input, shape index: {}]
  %s1 = inlined_call_operand.vmem [shape: f32[2,4,16,16], index: 1, kind: output, shape index: {}]
  $region1: #{custom-call} parent=0
    #allocation0 [shape = 's32[1]{0}', space=sflag, size = 0x4, scoped, tag = 'scoped memory for custom-call']
    %2 = vsyncpa [#allocation0], 0
    %s4 = sshll.u32 %s0, 4
    %s5 = int_to_ptr.hbm [resolvable:$true] %s4
    %s6 = sshll.u32 %s1, 4
    %s7 = int_to_ptr.vmem [resolvable:$true] %s6
    %9 = dma.hbm_to_vmem [thread:$0]  %s5, 2048, %s7, [#allocation0]
    %11 = dma.done [#allocation0], 2048
    %12 = vsyncpa [#allocation0], 1

// kernel: custom-call.2
$region0: #{custom-call.2}
  %s0 = inlined_call_operand.vmem [shape: f32[2,4,16,16], index: 0, kind: input, shape index: {}]
  %s1 = inlined_call_operand.vmem [shape: f32[2,4,16,16], index: 1, kind: input, shape index: {}]
  %s2 = inlined_call_operand.hbm [shape: c64[2,4,16,16], index: 2, kind: output, shape index: {}]
  %s3 = scalar_lea.hbm %s2, 128
  $region1: #{custom-call.2} parent=0
    #allocation0 [shape = 's32[1]{0}', space=sflag, size = 0x4, scoped, tag = 'scoped memory for custom-call.2']
    %4 = vsyncpa [#allocation0], 0
    %s6 = sshll.u32 %s0, 4
    %s7 = int_to_ptr.vmem [resolvable:$true] %s6
    %s8 = sshll.u32 %s2, 4
    %s9 = int_to_ptr.hbm [resolvable:$true] %s8
    %11 = dma.vmem_to_hbm [thread:$0]  %s7, 2048, %s9, [#allocation0]
    %13 = dma.done [#allocation0], 2048
    %14 = vsyncpa [#allocation0], 1
  $region2: #{custom-call.2} parent=0
    #allocation1 [shape = 's32[1]{0}', space=sflag, size = 0x4, scoped, tag = 'scoped memory for custom-call.2']
    %15 = vsyncpa [#allocation1], 0
    %s17 = sshll.u32 %s1, 4
    %s18 = int_to_ptr.vmem [resolvable:$true] %s17
    %s19 = sshll.u32 %s3, 4
    %s20 = int_to_ptr.hbm [resolvable:$true] %s19
    %22 = dma.vmem_to_hbm [thread:$0]  %s18, 2048, %s20, [#allocation1]
    %24 = dma.done [#allocation1], 2048
    %25 = vsyncpa [#allocation1], 1

// kernel: complex_relu.1
$region0: #{complex_relu.1}
  #allocation0 [shape = 'u32[]', space=smem, size = 0x4, offset = 0x4, fixed_abs, tag = 'smem constant byte address 0x4 - core index']
  #allocation1 [shape = 'u32[72,128]{1,0:T(1,128)}', space=vmem, size = 0x9000, scoped, tag = 'internal scratch']
  %s0 = inlined_call_operand.vmem [shape: f32[8,1024], index: 0, kind: input, shape index: {}, may-alias: {0,1}]
  %s1 = inlined_call_operand.vmem [shape: f32[8,1024], index: 1, kind: output, shape index: {}, may-alias: {0,1}]
  %s2 = sld [smem:[#allocation0]]
  $region14: #{complex_relu.1} parent=0
    _
  %s4 = ssub.s32 1, %s2
  %s5 = scalar_select 0, %s4, %s2
  // Predicated region
  $region2: #{complex_relu.1} parent=0 // pred_check
    _
  $region3: #{complex_relu.1} parent=0 // pred_check_branch
    %7 = sbr.rel (0) target = $region5
  $region4: #{complex_relu.1} parent=0 // pred_region
    _
  $region5: #{complex_relu.1} parent=0 // pred_fallthru
    _
  %v8 = vld [vmem:[%s0] sm:$0xff]
  %v9 = vld [vmem:[%s0 + $0x8] sm:$0xff]
  %v10 = vld [vmem:[%s0 + $0x10] sm:$0xff]
  %v11 = vld [vmem:[%s0 + $0x18] sm:$0xff]
  %v12 = vld [vmem:[%s0 + $0x20] sm:$0xff]
  %v13 = vld [vmem:[%s0 + $0x28] sm:$0xff]
  %v14 = vld [vmem:[%s0 + $0x30] sm:$0xff]
  %v15 = vld [vmem:[%s0 + $0x38] sm:$0xff]
  %v16 = vmax.f32 %v8, 0.0
  %v17 = vmax.f32 %v9, 0.0
  %v18 = vmax.f32 %v10, 0.0
  %v19 = vmax.f32 %v11, 0.0
  %v20 = vmax.f32 %v12, 0.0
  %v21 = vmax.f32 %v13, 0.0
  %v22 = vmax.f32 %v14, 0.0
  %v23 = vmax.f32 %v15, 0.0
  %24 = vst [vmem:[%s1] sm:$0xff] %v16
  %25 = vst [vmem:[%s1 + $0x8] sm:$0xff] %v17
  %26 = vst [vmem:[%s1 + $0x10] sm:$0xff] %v18
  %27 = vst [vmem:[%s1 + $0x18] sm:$0xff] %v19
  %28 = vst [vmem:[%s1 + $0x20] sm:$0xff] %v20
  %29 = vst [vmem:[%s1 + $0x28] sm:$0xff] %v21
  %30 = vst [vmem:[%s1 + $0x30] sm:$0xff] %v22
  %31 = vst [vmem:[%s1 + $0x38] sm:$0xff] %v23
  // Predicated region
  $region6: #{complex_relu.1} parent=0 // pred_check
    _
  $region7: #{complex_relu.1} parent=0 // pred_check_branch
    %33 = sbr.rel (0) target = $region9
  $region8: #{complex_relu.1} parent=0 // pred_region
    _
  $region9: #{complex_relu.1} parent=0 // pred_fallthru
    _
  // Predicated region
  $region10: #{complex_relu.1} parent=0 // pred_check
    _
  $region11: #{complex_relu.1} parent=0 // pred_check_branch
    %35 = sbr.rel (0) target = $region13
  $region12: #{complex_relu.1} parent=0 // pred_region
    _
  $region13: #{complex_relu.1} parent=0 // pred_fallthru
    _

</llo_original>
